<compile_context>
chip_gen: v7x
topology: tpu7x:2x2x1
jax: 0.10.0
libtpu: 0.0.40
codegen_flags: <defaults>
</compile_context>

<pallas_src>
import functools

import jax
import jax.numpy as jnp
from jax.experimental import pallas as pl
from jax.experimental.pallas import tpu as pltpu

EPS = 1e-5
EXPANSION = 4
LANE = 128


def _round_up(x, m):
    return ((x + m - 1) // m) * m


@functools.lru_cache(maxsize=None)
def _vmem_limit_bytes():
    """Generation-aware scoped-VMEM limit: leave headroom on v7x (64 MiB
    physical VMEM), allow more on v5e/v6e (128 MiB physical)."""
    cap = 0
    get_info = getattr(pltpu, "get_tpu_info", None)
    if get_info is not None:
        try:
            cap = int(getattr(get_info(), "vmem_capacity_bytes", 0) or 0)
        except Exception:
            cap = 0
    if cap <= 0:
        return 48 * 1024 * 1024                  # unknown generation: safe default
    if cap <= 96 * 1024 * 1024:                  # v7x-class (64 MiB physical)
        return 40 * 1024 * 1024
    return 64 * 1024 * 1024                      # v5e / v6e (128 MiB physical)


# ---------------------------------------------------------------------------
# Kernels 1 & 2: 1x1 conv as one resident-weight MXU matmul per M row tile.
# BN scale is already folded into w; the epilogue is `+ shift` and ReLU
# (kernel 2 additionally fuses the residual add).  The (K, N) weight and the
# (1, N) shift use constant index_maps, so they are fetched into VMEM once and
# stay resident across the whole M grid.
# TODO(synk): pipeline_mode=pl.Buffered(1) on the resident blocks would halve
# their VMEM footprint; skipped to keep the lowering maximally portable.
# ---------------------------------------------------------------------------
def _mm_shift_relu_kernel(x_ref, w_ref, b_ref, o_ref):
    acc = jnp.dot(x_ref[...], w_ref[...], preferred_element_type=jnp.float32)
    o_ref[...] = jnp.maximum(acc + b_ref[...], 0.0).astype(o_ref.dtype)


def _mm_shift_add_relu_kernel(x_ref, w_ref, b_ref, res_ref, o_ref):
    acc = jnp.dot(x_ref[...], w_ref[...], preferred_element_type=jnp.float32)
    acc = acc + b_ref[...] + res_ref[...].astype(jnp.float32)
    o_ref[...] = jnp.maximum(acc, 0.0).astype(o_ref.dtype)


def matmul_shift_relu(x, w, shift, residual=None, *, out_dtype=jnp.bfloat16,
                      tm_target=512):
    """relu(x @ w + shift [+ residual]).  x:(M,K) bf16, w:(K,N) bf16,
    shift:(1,N) f32, residual:(M,N) bf16.  K and N must be multiples of 128."""
    M, K = x.shape
    Kw, N = w.shape
    assert K == Kw and K % LANE == 0 and N % LANE == 0

    tm = min(tm_target, _round_up(M, 8))
    Mp = _round_up(M, tm)
    if Mp != M:
        x = jnp.pad(x, ((0, Mp - M), (0, 0)))
        if residual is not None:
            residual = jnp.pad(residual, ((0, Mp - M), (0, 0)))

    in_specs = [
        pl.BlockSpec((tm, K), lambda i: (i, 0)),
        pl.BlockSpec((K, N), lambda i: (0, 0)),      # resident weight
        pl.BlockSpec((1, N), lambda i: (0, 0)),      # resident shift
    ]
    operands = [x, w, shift]
    kernel = _mm_shift_relu_kernel
    if residual is not None:
        in_specs.append(pl.BlockSpec((tm, N), lambda i: (i, 0)))
        operands.append(residual)
        kernel = _mm_shift_add_relu_kernel

    out = pl.pallas_call(
        kernel,
        out_shape=jax.ShapeDtypeStruct((Mp, N), out_dtype),
        grid=(Mp // tm,),
        in_specs=in_specs,
        out_specs=pl.BlockSpec((tm, N), lambda i: (i, 0)),
        compiler_params=pltpu.CompilerParams(
            dimension_semantics=("parallel",),
            vmem_limit_bytes=_vmem_limit_bytes()),
    )(*operands)
    return out if Mp == M else out[:M]


# ---------------------------------------------------------------------------
# Kernel 3: 3x3 conv (stride 1, pad 1) + shift + ReLU.
# Grid = (image, row-tile).  Each step gets the padded rows it needs exactly
# once: a (TH, W+2, C) main block plus two single-row halo blocks (all
# BlockSpec-pipelined, so the window DMA is prefetched across grid steps).
# The kernel stages three column-shifted flat copies of that window in VMEM so
# each of the 9 taps is one aligned (TH*W, C) x (C, C) MXU matmul.  Only
# interior output pixels are computed, directly in (N*H*W, C) row layout.
# TODO(synk): conv1 could write straight into the spatially padded buffer to
# drop the remaining jnp.pad round trip; its flat-row tiling does not map
# affinely onto padded coordinates, so the single pad is kept.
# ---------------------------------------------------------------------------
def _pick_th(H, W, target_rows=512, max_th=16):
    # Largest divisor of H whose (TH*W, C) output block keeps a sublane-aligned
    # row count and a moderate tile size.
    cands = [t for t in range(1, H + 1)
             if H % t == 0 and ((t * W) % 8 == 0 or t == H)]
    good = [t for t in cands if t * W <= target_rows and t <= max_th]
    if good:
        return max(good)
    return min(cands) if cands else H


def _conv3x3_kernel(main_ref, haloA_ref, haloB_ref, w_ref, b_ref, o_ref,
                    x0_ref, x1_ref, x2_ref, *, TH, W, C):
    # main:  (1, TH, W+2, C)  padded image rows [h0, h0+TH)
    # haloA: (1, 1,  W+2, C)  padded image row   h0+TH
    # haloB: (1, 1,  W+2, C)  padded image row   h0+TH+1
    stage = (x0_ref, x1_ref, x2_ref)           # one staged copy per kw shift
    for r in range(TH + 2):
        if r < TH:
            row = main_ref[0, r]
        elif r == TH:
            row = haloA_ref[0, 0]
        else:
            row = haloB_ref[0, 0]
        for kw in range(3):
            stage[kw][r * W:(r + 1) * W, :] = row[kw:kw + W, :]

    acc = jnp.zeros((TH * W, C), jnp.float32)
    for kh in range(3):                        # 9 taps, static unroll
        for kw in range(3):
            xt = stage[kw][kh * W:(kh + TH) * W, :]
            acc = acc + jnp.dot(xt, w_ref[kh * 3 + kw],
                                preferred_element_type=jnp.float32)
    o_ref[0] = jnp.maximum(acc + b_ref[...], 0.0).astype(o_ref.dtype)


def conv3x3_shift_relu(y_nhwc, w_taps, shift, *, out_dtype=jnp.bfloat16):
    """3x3 / stride 1 / pad 1 conv + folded-BN shift + ReLU.
    y_nhwc:(N,H,W,C) bf16 (C mult of 128); w_taps:(9,C,C) bf16 (t = kh*3+kw,
    BN scale folded); shift:(1,C) f32.  Returns (N*H*W, C) interior rows."""
    N, H, W, C = y_nhwc.shape
    assert C % LANE == 0 and w_taps.shape == (9, C, C)

    TH = _pick_th(H, W)
    xp = jnp.pad(y_nhwc, ((0, 0), (1, 1), (1, 1), (0, 0)))   # (N, H+2, W+2, C)

    kernel = functools.partial(_conv3x3_kernel, TH=TH, W=W, C=C)
    out = pl.pallas_call(
        kernel,
        out_shape=jax.ShapeDtypeStruct((N, H * W, C), out_dtype),
        grid=(N, H // TH),
        in_specs=[
            pl.BlockSpec((1, TH, W + 2, C), lambda n, t: (n, t, 0, 0)),
            pl.BlockSpec((1, 1, W + 2, C),
                         lambda n, t: (n, t * TH + TH, 0, 0)),
            pl.BlockSpec((1, 1, W + 2, C),
                         lambda n, t: (n, t * TH + TH + 1, 0, 0)),
            pl.BlockSpec((9, C, C), lambda n, t: (0, 0, 0)),   # resident taps
            pl.BlockSpec((1, C), lambda n, t: (0, 0)),         # resident shift
        ],
        out_specs=pl.BlockSpec((1, TH * W, C), lambda n, t: (n, t, 0)),
        scratch_shapes=[pltpu.VMEM(((TH + 2) * W, C), jnp.bfloat16)
                        for _ in range(3)],
        compiler_params=pltpu.CompilerParams(
            dimension_semantics=("parallel", "parallel"),
            vmem_limit_bytes=_vmem_limit_bytes()),
    )(xp, xp, xp, w_taps, shift)
    return out.reshape(N * H * W, C)


# ---------------------------------------------------------------------------
# Glue: BN folding, weight packing (scale folded in, channels padded to 128)
# ---------------------------------------------------------------------------
def _fold_bn(gamma, beta, mean, var):
    scale = gamma / jnp.sqrt(var + EPS)
    shift = beta - mean * scale
    return scale.astype(jnp.float32), shift.astype(jnp.float32)


def init_params(key, in_channels, out_channels):
    exp_channels = out_channels * EXPANSION
    ks = jax.random.split(key, 3)

    def conv_w(k, cout, cin, kh, kw):
        # PyTorch conv weight layout (Cout, Cin, KH, KW)
        return 0.1 * jax.random.normal(k, (cout, cin, kh, kw), dtype=jnp.float32)

    def bn_p(c, idx):
        gamma = 1.0 + 0.01 * jnp.arange(c, dtype=jnp.float32)
        beta = 0.02 * jnp.arange(c, dtype=jnp.float32) - 0.01 * idx
        mean = 0.03 * jnp.arange(c, dtype=jnp.float32)
        var = 1.0 + 0.05 * jnp.arange(c, dtype=jnp.float32)
        return gamma, beta, mean, var

    return {
        "w1": conv_w(ks[0], out_channels, in_channels, 1, 1),
        "bn1": bn_p(out_channels, 1),
        "w2": conv_w(ks[1], out_channels, out_channels, 3, 3),
        "bn2": bn_p(out_channels, 2),
        "w3": conv_w(ks[2], exp_channels, out_channels, 1, 1),
        "bn3": bn_p(exp_channels, 3),
    }


def bottleneck_mem_forward(params, x_nchw, stride=1):
    """Forward of BottleNeckMem (downsample=None). x_nchw: (N, Cin, H, W)."""
    # TODO(synk): stride>1 requires a downsample path for the residual (as in
    # the full ResNet); the identity residual is only defined for stride=1.
    assert stride == 1
    N, Cin, H, W = x_nchw.shape

    w1, w2, w3 = params["w1"], params["w2"], params["w3"]
    Cmid, Cexp = w1.shape[0], w3.shape[0]
    assert Cexp == Cin, "identity residual requires in_channels == out_channels*4"

    Cin_p = _round_up(Cin, LANE)
    Cmid_p = _round_up(Cmid, LANE)
    Cexp_p = _round_up(Cexp, LANE)

    # TODO(synk): keep activations NHWC end-to-end across blocks to drop these
    # NCHW<->NHWC transposes (kept here only to preserve the PyTorch layout).
    x_nhwc = jnp.transpose(x_nchw, (0, 2, 3, 1)).astype(jnp.float32)
    M = N * H * W

    s1, b1 = _fold_bn(*params["bn1"])
    s2, b2 = _fold_bn(*params["bn2"])
    s3, b3 = _fold_bn(*params["bn3"])

    # conv1 (1x1): (Cin, Cmid) matmul weights, BN scale folded, lane-padded
    w1_mat = w1[:, :, 0, 0].T * s1[None, :]
    w1_mat = jnp.pad(w1_mat, ((0, Cin_p - Cin), (0, Cmid_p - Cmid))).astype(jnp.bfloat16)
    b1_p = jnp.pad(b1, (0, Cmid_p - Cmid)).reshape(1, Cmid_p)

    # conv2 (3x3): 9 taps of (Cmid, Cmid), BN scale folded, lane-padded
    w2_taps = jnp.transpose(w2, (2, 3, 1, 0)).reshape(9, Cmid, Cmid) * s2[None, None, :]
    w2_taps = jnp.pad(w2_taps, ((0, 0), (0, Cmid_p - Cmid),
                                (0, Cmid_p - Cmid))).astype(jnp.bfloat16)
    b2_p = jnp.pad(b2, (0, Cmid_p - Cmid)).reshape(1, Cmid_p)

    # conv3 (1x1): (Cmid, Cexp) matmul weights, BN scale folded, lane-padded
    w3_mat = w3[:, :, 0, 0].T * s3[None, :]
    w3_mat = jnp.pad(w3_mat, ((0, Cmid_p - Cmid), (0, Cexp_p - Cexp))).astype(jnp.bfloat16)
    b3_p = jnp.pad(b3, (0, Cexp_p - Cexp)).reshape(1, Cexp_p)

    # ---- conv1 + bn1 + relu (bf16 MXU, f32 accumulate, resident weight) ----
    x_rows = jnp.pad(x_nhwc.reshape(M, Cin),
                     ((0, 0), (0, Cin_p - Cin))).astype(jnp.bfloat16)
    y1 = matmul_shift_relu(x_rows, w1_mat, b1_p)                          # (M, Cmid_p)

    # ---- conv2 (3x3, pad 1) + bn2 + relu: halo'd union window, 9 matmuls ----
    y2 = conv3x3_shift_relu(y1.reshape(N, H, W, Cmid_p), w2_taps, b2_p)   # (M, Cmid_p)

    # ---- conv3 + bn3 + residual + relu (fused, bf16 residual) ----
    res_rows = jnp.pad(x_nhwc.reshape(M, Cin),
                       ((0, 0), (0, Cexp_p - Cin))).astype(jnp.bfloat16)
    y3 = matmul_shift_relu(y2, w3_mat, b3_p, residual=res_rows,
                           out_dtype=jnp.float32)                          # (M, Cexp_p)

    out = y3[:, :Cexp].reshape(N, H, W, Cexp)
    return jnp.transpose(out, (0, 3, 1, 2))                               # NCHW


# ---------------------------------------------------------------------------
# Pure-JAX reference (f32, highest precision) for a correctness check
# ---------------------------------------------------------------------------
def _reference_forward(params, x_nchw):
    x = jnp.transpose(x_nchw, (0, 2, 3, 1)).astype(jnp.float32)

    def conv(h, w, padding):
        wh = jnp.transpose(w, (2, 3, 1, 0))                 # HWIO
        return jax.lax.conv_general_dilated(
            h, wh, (1, 1), padding,
            dimension_numbers=("NHWC", "HWIO", "NHWC"),
            precision=jax.lax.Precision.HIGHEST)

    def bn(h, p):
        g, b, m, v = p
        return (h - m) * (g / jnp.sqrt(v + EPS)) + b

    y = jax.nn.relu(bn(conv(x, params["w1"], "VALID"), params["bn1"]))
    y = jax.nn.relu(bn(conv(y, params["w2"], [(1, 1), (1, 1)]), params["bn2"]))
    y = bn(conv(y, params["w3"], "VALID"), params["bn3"])
    y = jax.nn.relu(y + x)
    return jnp.transpose(y, (0, 3, 1, 2))


if __name__ == "__main__":
    key = jax.random.PRNGKey(0)
    k_x, k_p = jax.random.split(key)

    # small shapes: batch=2, out_channels=4, in_channels = 4*4 = 16 (so the
    # identity residual add is valid, as in a real ResNet stage), spatial=8
    batch, out_channels = 2, 4
    in_channels = out_channels * EXPANSION
    H = W = 8

    x = jax.random.normal(k_x, (batch, in_channels, H, W), dtype=jnp.float32)
    params = init_params(k_p, in_channels, out_channels)

    out = bottleneck_mem_forward(params, x, stride=1)
    jax.block_until_ready(out)

    assert out.shape == (batch, out_channels * EXPANSION, H, W)
    assert bool(jnp.all(out >= 0.0))          # final ReLU
    assert bool(jnp.all(jnp.isfinite(out)))

    ref = _reference_forward(params, x)
    max_err = float(jnp.max(jnp.abs(out - ref)))
    assert max_err < 0.2, f"mismatch vs reference: max abs err = {max_err}"

    print("KERNEL_OK")
</pallas_src>

<mosaic_0001>
module attributes {stable_mosaic.version = 11 : i64} {
  func.func @_mm_shift_relu_kernel(%arg0: i32, %arg1: memref<128x128xbf16, #tpu.memory_space<vmem>>, %arg2: memref<128x128xbf16, #tpu.memory_space<vmem>>, %arg3: memref<1x128xf32, #tpu.memory_space<vmem>>, %arg4: memref<128x128xbf16, #tpu.memory_space<vmem>>) attributes {dimension_semantics = [#tpu.dimension_semantics<parallel>], iteration_bounds = array<i64: 1>, scalar_prefetch = 0 : i64, scratch_operands = 0 : i64, tpu.core_type = #tpu.core_type<tc>, window_params = [{transform_indices = @transform_0, window_bounds = array<i64: 128, 128>}, {pipeline_mode = #tpu.pipeline_mode<synchronous>, transform_indices = @transform_1, window_bounds = array<i64: 128, 128>}, {pipeline_mode = #tpu.pipeline_mode<synchronous>, transform_indices = @transform_2, window_bounds = array<i64: 1, 128>}, {transform_indices = @transform_3, window_bounds = array<i64: 128, 128>}]} {
    %c0 = arith.constant 0 : index
    %c0_0 = arith.constant 0 : index
    %0 = vector.load %arg1[%c0, %c0_0] : memref<128x128xbf16, #tpu.memory_space<vmem>>, vector<128x128xbf16>
    %c0_1 = arith.constant 0 : index
    %c0_2 = arith.constant 0 : index
    %1 = vector.load %arg2[%c0_1, %c0_2] : memref<128x128xbf16, #tpu.memory_space<vmem>>, vector<128x128xbf16>
    %cst = arith.constant dense<0.000000e+00> : vector<128x128xf32>
    %2 = tpu.matmul %0, %1, %cst {dimension_numbers = #tpu.dot_dimension_numbers<[1], [0], [0], [1], [0, 0, 1, 1], [], []>} : vector<128x128xbf16>, vector<128x128xbf16>, vector<128x128xf32> -> vector<128x128xf32>
    %c0_3 = arith.constant 0 : index
    %c0_4 = arith.constant 0 : index
    %3 = vector.load %arg3[%c0_3, %c0_4] : memref<1x128xf32, #tpu.memory_space<vmem>>, vector<1x128xf32>
    %4 = vector.broadcast %3 : vector<1x128xf32> to vector<128x128xf32>
    %5 = arith.addf %2, %4 : vector<128x128xf32>
    %cst_5 = arith.constant 0.000000e+00 : f32
    %6 = vector.broadcast %cst_5 : f32 to vector<128x128xf32>
    %7 = arith.maximumf %5, %6 : vector<128x128xf32>
    %8 = arith.truncf %7 : vector<128x128xf32> to vector<128x128xbf16>
    %c0_6 = arith.constant 0 : index
    %c0_7 = arith.constant 0 : index
    %9 = vector.load %arg4[%c0_6, %c0_7] : memref<128x128xbf16, #tpu.memory_space<vmem>>, vector<128x128xbf16>
    tpu.vector_store %arg4[%c0_6, %c0_7], %8 {strides = array<i32>} : memref<128x128xbf16, #tpu.memory_space<vmem>>, vector<128x128xbf16>,
    return
  }
  func.func @transform_0(%arg0: i32) -> (i32, i32) {
    %c0_i32 = arith.constant 0 : i32
    %c0_i32_0 = arith.constant 0 : i32
    return %arg0, %c0_i32 : i32, i32
  }
  func.func @transform_1(%arg0: i32) -> (i32, i32) {
    %c0_i32 = arith.constant 0 : i32
    %c0_i32_0 = arith.constant 0 : i32
    %c0_i32_1 = arith.constant 0 : i32
    return %c0_i32, %c0_i32_0 : i32, i32
  }
  func.func @transform_2(%arg0: i32) -> (i32, i32) {
    %c0_i32 = arith.constant 0 : i32
    %c0_i32_0 = arith.constant 0 : i32
    %c0_i32_1 = arith.constant 0 : i32
    return %c0_i32, %c0_i32_0 : i32, i32
  }
  func.func @transform_3(%arg0: i32) -> (i32, i32) {
    %c0_i32 = arith.constant 0 : i32
    %c0_i32_0 = arith.constant 0 : i32
    return %arg0, %c0_i32 : i32, i32
  }
}

</mosaic_0001>

<llo_original>
// kernel: tpu_custom_call.1
$region0: #{tpu_custom_call.1}
  #allocation0 [shape = 'u32[]', space=smem, size = 0x4, offset = 0x4, fixed_abs, tag = 'smem constant byte address 0x4 - core index']
  #allocation1 [shape = 'u32[144,128]{1,0:T(1,128)}', space=vmem, size = 0x12000, scoped, tag = 'internal scratch']
  %s0 = inlined_call_operand.hbm [shape: bf16[128,128], index: 0, kind: input, shape index: {}]
  %s1 = inlined_call_operand.hbm [shape: bf16[128,128], index: 1, kind: input, shape index: {}]
  %s2 = inlined_call_operand.vmem [shape: f32[1,128], index: 2, kind: input, shape index: {}]
  %s3 = inlined_call_operand.hbm [shape: bf16[128,128], index: 3, kind: output, shape index: {}]
  %s4 = sld [smem:[#allocation0]]
  $region30: #{tpu_custom_call.1} parent=0
    _
  %s6 = ssub.s32 1, %s4
  %s7 = scalar_select 0, %s6, %s4
  $region1: #{tpu_custom_call.1} parent=0
    #allocation2 [shape = 'u8[32768]{0}', space=vmem, size = 0x8000, scoped, tag = 'input window, operand 0, single buffered']
    #allocation3 [shape = 's32[1]{0}', space=sflag, size = 0x4, scoped, tag = 'scoped memory for tpu_custom_call.1']
    #allocation4 [shape = 's32[1]{0}', space=sflag, size = 0x4, scoped, tag = 'scoped memory for tpu_custom_call.1']
    #allocation5 [shape = 'u8[32768]{0}', space=vmem, size = 0x8000, scoped, tag = 'input window, operand 1, single buffered']
    #allocation6 [shape = 's32[1]{0}', space=sflag, size = 0x4, scoped, tag = 'scoped memory for tpu_custom_call.1']
    #allocation7 [shape = 'u8[32768]{0}', space=vmem, size = 0x8000, scoped, tag = 'output window, operand 0, single buffered']
    %8 = vsyncpa [#allocation3], 0
    %9 = vsyncpa [#allocation6], 0
    %10 = vsyncpa [#allocation4], 0
    // Predicated region
    $region2: #{tpu_custom_call.1} parent=1 // pred_check
      _
    $region3: #{tpu_custom_call.1} parent=1 // pred_check_branch
      %12 = sbr.rel (0) target = $region5
    $region4: #{tpu_custom_call.1} parent=1 // pred_region
      %s14 = ssub.s32 1024, 1024
      %15 = vsyncadd [#allocation3], %s14
      %s16 = sshll.u32 [#allocation2], 4
      %s17 = int_to_ptr.vmem [resolvable:$true] %s16
      %22 = dma.hbm_to_vmem [thread:$0]  %s0, 1024, %s17, [#allocation3], 64, 64, 4
    $region5: #{tpu_custom_call.1} parent=1 // pred_fallthru
      _
    // Predicated region
    $region6: #{tpu_custom_call.1} parent=1 // pred_check
      _
    $region7: #{tpu_custom_call.1} parent=1 // pred_check_branch
      %24 = sbr.rel (0) target = $region9
    $region8: #{tpu_custom_call.1} parent=1 // pred_region
      %s26 = ssub.s32 1024, 1024
      %27 = vsyncadd [#allocation6], %s26
      %s28 = sshll.u32 [#allocation5], 4
      %s29 = int_to_ptr.vmem [resolvable:$true] %s28
      %34 = dma.hbm_to_vmem [thread:$0]  %s1, 1024, %s29, [#allocation6], 64, 64, 4
    $region9: #{tpu_custom_call.1} parent=1 // pred_fallthru
      _
    // Predicated region
    $region10: #{tpu_custom_call.1} parent=1 // pred_check
      _
    $region11: #{tpu_custom_call.1} parent=1 // pred_check_branch
      %36 = sbr.rel (0) target = $region13
    $region12: #{tpu_custom_call.1} parent=1 // pred_region
      _
    $region13: #{tpu_custom_call.1} parent=1 // pred_fallthru
      _
    // Predicated region
    $region14: #{tpu_custom_call.1} parent=1 // pred_check
      _
    $region15: #{tpu_custom_call.1} parent=1 // pred_check_branch
      %38 = sbr.rel (0) target = $region17
    $region16: #{tpu_custom_call.1} parent=1 // pred_region
      %39 = dma.done [#allocation3], 1024
    $region17: #{tpu_custom_call.1} parent=1 // pred_fallthru
      _
    // Predicated region
    $region18: #{tpu_custom_call.1} parent=1 // pred_check
      _
    $region19: #{tpu_custom_call.1} parent=1 // pred_check_branch
      %41 = sbr.rel (0) target = $region21
    $region20: #{tpu_custom_call.1} parent=1 // pred_region
      %42 = dma.done [#allocation6], 1024
    $region21: #{tpu_custom_call.1} parent=1 // pred_fallthru
      _
    %v44 = vld [vmem:[#allocation2] sm:$0xf]
    %v45 = vld [vmem:[#allocation2 + $0x4] sm:$0xf]
    %v46 = vld [vmem:[#allocation2 + $0x8] sm:$0xf]
    %v47 = vld [vmem:[#allocation2 + $0xc] sm:$0xf]
    %v48 = vld [vmem:[#allocation2 + $0x10] sm:$0xf]
    %v49 = vld [vmem:[#allocation2 + $0x14] sm:$0xf]
    %v50 = vld [vmem:[#allocation2 + $0x18] sm:$0xf]
    %v51 = vld [vmem:[#allocation2 + $0x1c] sm:$0xf]
    %v52 = vld [vmem:[#allocation2 + $0x20] sm:$0xf]
    %v53 = vld [vmem:[#allocation2 + $0x24] sm:$0xf]
    %v54 = vld [vmem:[#allocation2 + $0x28] sm:$0xf]
    %v55 = vld [vmem:[#allocation2 + $0x2c] sm:$0xf]
    %v56 = vld [vmem:[#allocation2 + $0x30] sm:$0xf]
    %v57 = vld [vmem:[#allocation2 + $0x34] sm:$0xf]
    %v58 = vld [vmem:[#allocation2 + $0x38] sm:$0xf]
    %v59 = vld [vmem:[#allocation2 + $0x3c] sm:$0xf]
    %v60 = vld [vmem:[#allocation5] sm:$0xf]
    %v61 = vld [vmem:[#allocation5 + $0x4] sm:$0xf]
    %v62 = vld [vmem:[#allocation5 + $0x8] sm:$0xf]
    %v63 = vld [vmem:[#allocation5 + $0xc] sm:$0xf]
    %v64 = vld [vmem:[#allocation5 + $0x10] sm:$0xf]
    %v65 = vld [vmem:[#allocation5 + $0x14] sm:$0xf]
    %v66 = vld [vmem:[#allocation5 + $0x18] sm:$0xf]
    %v67 = vld [vmem:[#allocation5 + $0x1c] sm:$0xf]
    %v68 = vld [vmem:[#allocation5 + $0x20] sm:$0xf]
    %v69 = vld [vmem:[#allocation5 + $0x24] sm:$0xf]
    %v70 = vld [vmem:[#allocation5 + $0x28] sm:$0xf]
    %v71 = vld [vmem:[#allocation5 + $0x2c] sm:$0xf]
    %v72 = vld [vmem:[#allocation5 + $0x30] sm:$0xf]
    %v73 = vld [vmem:[#allocation5 + $0x34] sm:$0xf]
    %v74 = vld [vmem:[#allocation5 + $0x38] sm:$0xf]
    %v75 = vld [vmem:[#allocation5 + $0x3c] sm:$0xf]
    %v76 = vld [vmem:[%s2] sm:$0x1]
    %v78 = vlaneseq
    %v79 = vshrl.u32 %v78, 7
    %v80 = vsub.s32 0, %v79
    %v81 = vrot.slane %v76, %v80
    %v99 = vunpack.c.l.b16 %v44
    %v100 = vunpack.c.l.b16 %v45
    %v101 = vunpack.c.l.b16 %v46
    %v102 = vunpack.c.l.b16 %v47
    %v103 = vunpack.c.l.b16 %v48
    %v104 = vunpack.c.l.b16 %v49
    %v105 = vunpack.c.l.b16 %v50
    %v106 = vunpack.c.l.b16 %v51
    %v107 = vunpack.c.l.b16 %v52
    %v108 = vunpack.c.l.b16 %v53
    %v109 = vunpack.c.l.b16 %v54
    %v110 = vunpack.c.l.b16 %v55
    %v111 = vunpack.c.l.b16 %v56
    %v112 = vunpack.c.l.b16 %v57
    %v113 = vunpack.c.l.b16 %v58
    %v114 = vunpack.c.l.b16 %v59
    %v115 = vpack.c.b16 %v100, %v99
    %v116 = vpack.c.b16 %v102, %v101
    %v117 = vpack.c.b16 %v104, %v103
    %v118 = vpack.c.b16 %v106, %v105
    %v119 = vpack.c.b16 %v108, %v107
    %v120 = vpack.c.b16 %v110, %v109
    %v121 = vpack.c.b16 %v112, %v111
    %v122 = vpack.c.b16 %v114, %v113
    %v147 = vunpack.c.l.b16 %v60
    %v148 = vunpack.c.l.b16 %v61
    %v149 = vunpack.c.l.b16 %v62
    %v150 = vunpack.c.l.b16 %v63
    %v151 = vunpack.c.l.b16 %v64
    %v152 = vunpack.c.l.b16 %v65
    %v153 = vunpack.c.l.b16 %v66
    %v154 = vunpack.c.l.b16 %v67
    %v155 = vunpack.c.l.b16 %v68
    %v156 = vunpack.c.l.b16 %v69
    %v157 = vunpack.c.l.b16 %v70
    %v158 = vunpack.c.l.b16 %v71
    %v159 = vunpack.c.l.b16 %v72
    %v160 = vunpack.c.l.b16 %v73
    %v161 = vunpack.c.l.b16 %v74
    %v162 = vunpack.c.l.b16 %v75
    %v163 = vpack.c.b16 %v148, %v147
    %v164 = vpack.c.b16 %v150, %v149
    %v165 = vpack.c.b16 %v152, %v151
    %v166 = vpack.c.b16 %v154, %v153
    %v167 = vpack.c.b16 %v156, %v155
    %v168 = vpack.c.b16 %v158, %v157
    %v169 = vpack.c.b16 %v160, %v159
    %v170 = vpack.c.b16 %v162, %v161
    %179 = vmatprep.subr.bf16.mxu0 0
    %180 = vmatpush1.bf16.msra.mxu0 %v163
    %181 = vmatprep.subr.bf16.mxu0 0
    %182 = vmatpush1.bf16.msra.mxu0 %v164
    %183 = vmatprep.subr.bf16.mxu0 0
    %184 = vmatpush1.bf16.msra.mxu0 %v165
    %185 = vmatprep.subr.bf16.mxu0 0
    %186 = vmatpush1.bf16.msra.mxu0 %v166
    %187 = vmatprep.subr.bf16.mxu0 0
    %188 = vmatpush1.bf16.msra.mxu0 %v167
    %189 = vmatprep.subr.bf16.mxu0 0
    %190 = vmatpush1.bf16.msra.mxu0 %v168
    %191 = vmatprep.subr.bf16.mxu0 0
    %192 = vmatpush1.bf16.msra.mxu0 %v169
    %193 = vmatprep.subr.bf16.mxu0 0
    %194 = vmatpush1.bf16.msra.mxu0 %v170
    %195 = vmatprep.subr.bf16.mxu0 0
    %196 = vmatpush1.bf16.msra.mxu0 0
    %197 = vmatprep.subr.bf16.mxu0 0
    %198 = vmatpush1.bf16.msra.mxu0 0
    %199 = vmatprep.subr.bf16.mxu0 0
    %200 = vmatpush1.bf16.msra.mxu0 0
    %201 = vmatprep.subr.bf16.mxu0 0
    %202 = vmatpush1.bf16.msra.mxu0 0
    %203 = vmatprep.subr.bf16.mxu0 0
    %204 = vmatpush1.bf16.msra.mxu0 0
    %205 = vmatprep.subr.bf16.mxu0 0
    %206 = vmatpush1.bf16.msra.mxu0 0
    %207 = vmatprep.subr.bf16.mxu0 0
    %208 = vmatpush1.bf16.msra.mxu0 0
    %209 = vmatprep.subr.bf16.mxu0 0
    %210 = vmatpush1.bf16.msra.mxu0 0
    %211 = vmatprep.mubr.bf16.mxu0 0
    %212 = vmatmul.mubr.bf16.gmra.mrb[0].mxu0 %v115
    %v213 = vpop.f32.mrb[0].mxu0
    %v214 = vadd.f32 %v81, %v213
    %v215 = vpop.f32.mrb[0].mxu0
    %v216 = vpop.f32.mrb[0].mxu0
    %v217 = vadd.f32 %v81, %v216
    %v218 = vpop.f32.mrb[0].mxu0
    %219 = vmatprep.mubr.bf16.mxu0 0
    %220 = vmatmul.mubr.bf16.gmra.mrb[0].mxu0 %v116
    %v221 = vpop.f32.mrb[0].mxu0
    %v222 = vadd.f32 %v81, %v221
    %v223 = vpop.f32.mrb[0].mxu0
    %v224 = vpop.f32.mrb[0].mxu0
    %v225 = vadd.f32 %v81, %v224
    %v226 = vpop.f32.mrb[0].mxu0
    %227 = vmatprep.mubr.bf16.mxu0 0
    %228 = vmatmul.mubr.bf16.gmra.mrb[0].mxu0 %v117
    %v229 = vpop.f32.mrb[0].mxu0
    %v230 = vadd.f32 %v81, %v229
    %v231 = vpop.f32.mrb[0].mxu0
    %v232 = vpop.f32.mrb[0].mxu0
    %v233 = vadd.f32 %v81, %v232
    %v234 = vpop.f32.mrb[0].mxu0
    %235 = vmatprep.mubr.bf16.mxu0 0
    %236 = vmatmul.mubr.bf16.gmra.mrb[0].mxu0 %v118
    %v237 = vpop.f32.mrb[0].mxu0
    %v238 = vadd.f32 %v81, %v237
    %v239 = vpop.f32.mrb[0].mxu0
    %v240 = vpop.f32.mrb[0].mxu0
    %v241 = vadd.f32 %v81, %v240
    %v242 = vpop.f32.mrb[0].mxu0
    %243 = vmatprep.mubr.bf16.mxu0 0
    %244 = vmatmul.mubr.bf16.gmra.mrb[0].mxu0 %v119
    %v245 = vpop.f32.mrb[0].mxu0
    %v246 = vadd.f32 %v81, %v245
    %v247 = vpop.f32.mrb[0].mxu0
    %v248 = vpop.f32.mrb[0].mxu0
    %v249 = vadd.f32 %v81, %v248
    %v250 = vpop.f32.mrb[0].mxu0
    %251 = vmatprep.mubr.bf16.mxu0 0
    %252 = vmatmul.mubr.bf16.gmra.mrb[0].mxu0 %v120
    %v253 = vpop.f32.mrb[0].mxu0
    %v254 = vadd.f32 %v81, %v253
    %v255 = vpop.f32.mrb[0].mxu0
    %v256 = vpop.f32.mrb[0].mxu0
    %v257 = vadd.f32 %v81, %v256
    %v258 = vpop.f32.mrb[0].mxu0
    %259 = vmatprep.mubr.bf16.mxu0 0
    %260 = vmatmul.mubr.bf16.gmra.mrb[0].mxu0 %v121
    %v261 = vpop.f32.mrb[0].mxu0
    %v262 = vadd.f32 %v81, %v261
    %v263 = vpop.f32.mrb[0].mxu0
    %v264 = vpop.f32.mrb[0].mxu0
    %v265 = vadd.f32 %v81, %v264
    %v266 = vpop.f32.mrb[0].mxu0
    %267 = vmatprep.mubr.bf16.mxu0 0
    %268 = vmatmul.mubr.bf16.gmra.mrb[0].mxu0 %v122
    %v269 = vpop.f32.mrb[0].mxu0
    %v270 = vadd.f32 %v81, %v269
    %v271 = vpop.f32.mrb[0].mxu0
    %v272 = vpop.f32.mrb[0].mxu0
    %v273 = vadd.f32 %v81, %v272
    %v274 = vpop.f32.mrb[0].mxu0
    %275 = vdwg.mxu0
    %v276 = vmax.f32 %v214, 0.0
    %v277 = vmax.f32 %v217, 0.0
    %v278 = vmax.f32 %v222, 0.0
    %v279 = vmax.f32 %v225, 0.0
    %v280 = vmax.f32 %v230, 0.0
    %v281 = vmax.f32 %v233, 0.0
    %v282 = vmax.f32 %v238, 0.0
    %v283 = vmax.f32 %v241, 0.0
    %v284 = vmax.f32 %v246, 0.0
    %v285 = vmax.f32 %v249, 0.0
    %v286 = vmax.f32 %v254, 0.0
    %v287 = vmax.f32 %v257, 0.0
    %v288 = vmax.f32 %v262, 0.0
    %v289 = vmax.f32 %v265, 0.0
    %v290 = vmax.f32 %v270, 0.0
    %v291 = vmax.f32 %v273, 0.0
    %v292 = vpack.c.bf16 %v277, %v276
    %v293 = vpack.c.bf16 %v279, %v278
    %v294 = vpack.c.bf16 %v281, %v280
    %v295 = vpack.c.bf16 %v283, %v282
    %v296 = vpack.c.bf16 %v285, %v284
    %v297 = vpack.c.bf16 %v287, %v286
    %v298 = vpack.c.bf16 %v289, %v288
    %v299 = vpack.c.bf16 %v291, %v290
    %v308 = vunpack.c.l.b16 %v292
    %v309 = vunpack.c.h.b16 %v292
    %v310 = vunpack.c.l.b16 %v293
    %v311 = vunpack.c.h.b16 %v293
    %v312 = vunpack.c.l.b16 %v294
    %v313 = vunpack.c.h.b16 %v294
    %v314 = vunpack.c.l.b16 %v295
    %v315 = vunpack.c.h.b16 %v295
    %v316 = vunpack.c.l.b16 %v296
    %v317 = vunpack.c.h.b16 %v296
    %v318 = vunpack.c.l.b16 %v297
    %v319 = vunpack.c.h.b16 %v297
    %v320 = vunpack.c.l.b16 %v298
    %v321 = vunpack.c.h.b16 %v298
    %v322 = vunpack.c.l.b16 %v299
    %v323 = vunpack.c.h.b16 %v299
    %v324 = vpack.c.b16 %v308, %v308
    %v325 = vpack.c.b16 %v309, %v309
    %v326 = vpack.c.b16 %v310, %v310
    %v327 = vpack.c.b16 %v311, %v311
    %v328 = vpack.c.b16 %v312, %v312
    %v329 = vpack.c.b16 %v313, %v313
    %v330 = vpack.c.b16 %v314, %v314
    %v331 = vpack.c.b16 %v315, %v315
    %v332 = vpack.c.b16 %v316, %v316
    %v333 = vpack.c.b16 %v317, %v317
    %v334 = vpack.c.b16 %v318, %v318
    %v335 = vpack.c.b16 %v319, %v319
    %v336 = vpack.c.b16 %v320, %v320
    %v337 = vpack.c.b16 %v321, %v321
    %v338 = vpack.c.b16 %v322, %v322
    %v339 = vpack.c.b16 %v323, %v323
    %356 = vst [vmem:[#allocation7] sm:$0xf] %v324
    %357 = vst [vmem:[#allocation7 + $0x4] sm:$0xf] %v325
    %358 = vst [vmem:[#allocation7 + $0x8] sm:$0xf] %v326
    %359 = vst [vmem:[#allocation7 + $0xc] sm:$0xf] %v327
    %360 = vst [vmem:[#allocation7 + $0x10] sm:$0xf] %v328
    %361 = vst [vmem:[#allocation7 + $0x14] sm:$0xf] %v329
    %362 = vst [vmem:[#allocation7 + $0x18] sm:$0xf] %v330
    %363 = vst [vmem:[#allocation7 + $0x1c] sm:$0xf] %v331
    %364 = vst [vmem:[#allocation7 + $0x20] sm:$0xf] %v332
    %365 = vst [vmem:[#allocation7 + $0x24] sm:$0xf] %v333
    %366 = vst [vmem:[#allocation7 + $0x28] sm:$0xf] %v334
    %367 = vst [vmem:[#allocation7 + $0x2c] sm:$0xf] %v335
    %368 = vst [vmem:[#allocation7 + $0x30] sm:$0xf] %v336
    %369 = vst [vmem:[#allocation7 + $0x34] sm:$0xf] %v337
    %370 = vst [vmem:[#allocation7 + $0x38] sm:$0xf] %v338
    %371 = vst [vmem:[#allocation7 + $0x3c] sm:$0xf] %v339
    // Predicated region
    $region22: #{tpu_custom_call.1} parent=1 // pred_check
      _
    $region23: #{tpu_custom_call.1} parent=1 // pred_check_branch
      %373 = sbr.rel (0) target = $region25
    $region24: #{tpu_custom_call.1} parent=1 // pred_region
      %s375 = ssub.s32 1024, 1024
      %376 = vsyncadd [#allocation4], %s375
      %s377 = sshll.u32 [#allocation7], 4
      %s378 = int_to_ptr.vmem [resolvable:$true] %s377
      %383 = dma.vmem_to_hbm [thread:$0]  %s378, 1024, %s3, [#allocation4], 64, 64, 4
    $region25: #{tpu_custom_call.1} parent=1 // pred_fallthru
      _
    // Predicated region
    $region26: #{tpu_custom_call.1} parent=1 // pred_check
      _
    $region27: #{tpu_custom_call.1} parent=1 // pred_check_branch
      %385 = sbr.rel (0) target = $region29
    $region28: #{tpu_custom_call.1} parent=1 // pred_region
      %386 = dma.done [#allocation4], 1024
    $region29: #{tpu_custom_call.1} parent=1 // pred_fallthru
      _
    %387 = vsyncpa [#allocation3], 1
    %388 = vsyncpa [#allocation6], 1
    %389 = vsyncpa [#allocation4], 1

</llo_original>
